<compile_context>
chip_gen: v7x
topology: tpu7x:2x2x1
jax: 0.10.0
libtpu: 0.0.40
codegen_flags: <defaults>
</compile_context>

<pallas_src>
import functools

import jax
import jax.numpy as jnp
from jax.experimental import pallas as pl
from jax.experimental.pallas import tpu as pltpu

BN_EPS = 1e-5
NEG_SLOPE = 0.2          # torch.nn.LeakyReLU(negative_slope=0.2)
LANE = 128               # TPU lane width: keep channel dims 128-dense.


# --------------------------------- helpers -----------------------------------
def _round_up(v, m):
  return (v + m - 1) // m * m


def _pad2d(a, rows, cols, value=0.0):
  r, c = a.shape
  return jnp.pad(a, ((0, rows - r), (0, cols - c)), constant_values=value)


def _lrelu(x):
  return jnp.where(x >= 0, x, NEG_SLOPE * x)


def _masked_stats(h, row_base, n_valid):
  """Per-tile (sum, sum_sq) over real rows only (padded rows masked out)."""
  rows = row_base + jax.lax.broadcasted_iota(jnp.int32, (h.shape[0], 1), 0)
  hm = jnp.where(rows < n_valid, h, 0.0)
  return jnp.concatenate([jnp.sum(hm, axis=0, keepdims=True),
                          jnp.sum(hm * hm, axis=0, keepdims=True)], axis=0)


def _bn_scale_shift(stats_parts, gamma, beta, n_valid):
  """[T, 2, C] per-tile partial (sum, sum_sq) -> BN scale/shift ([1, C] f32).

  Tiny [1, C] math done once in the wrapper (hoisted out of the per-tile
  bodies).  Statistics stay f32 end-to-end even though features are bf16.
  """
  stats = jnp.sum(stats_parts, axis=0)
  mean = stats[0:1, :] / n_valid
  # E[x^2]-E[x]^2 can go epsilon-negative under cancellation; clamp before eps.
  var = jnp.maximum(stats[1:2, :] / n_valid - mean * mean, 0.0)
  scale = gamma * jax.lax.rsqrt(var + BN_EPS)      # biased var (matches torch)
  shift = beta - mean * scale
  return scale, shift


def _compiler_params(block_bytes):
  """Parallel row tiles + an explicit VMEM budget for the pipelined blocks."""
  want = 2 * int(block_bytes) + (4 << 20)      # double-buffered blocks + slack
  limit = min(max(want, 32 << 20), 64 << 20)   # raise v5e's 16 MiB scoped
  return pltpu.CompilerParams(                 # default, fit v7x's 64 MiB VMEM
      dimension_semantics=("parallel",),
      vmem_limit_bytes=limit)


def _default_tile_n():
  """Rows per grid step: 512 on 128 MiB-VMEM chips (v5e/v6e), 256 on v7x."""
  try:
    vmem = pltpu.get_tpu_info().vmem_capacity_bytes
  except Exception:
    vmem = 128 << 20
  return 256 if vmem <= (64 << 20) else 512


# ------------- Kernel 1: uconv0 matmul + per-tile BN0 stat partials ----------
def _matmul_stats_kernel(x_ref, w_ref, h_ref, stats_ref, *, n_valid):
  i = pl.program_id(0)
  h = jnp.dot(x_ref[...], w_ref[...], preferred_element_type=jnp.float32)
  h_ref[...] = h.astype(h_ref.dtype)
  stats_ref[...] = _masked_stats(h, i * h.shape[0], n_valid)[None]


def matmul_stats(x, w, n_valid, tile_n):
  n_pad, c_in = x.shape
  c_out = w.shape[1]
  n_tiles = n_pad // tile_n
  blk = (tile_n * c_in + c_in * c_out + tile_n * c_out) * 2 + 2 * c_out * 4
  kernel = functools.partial(_matmul_stats_kernel, n_valid=n_valid)
  return pl.pallas_call(
      kernel,
      grid=(n_tiles,),
      in_specs=[pl.BlockSpec((tile_n, c_in), lambda i: (i, 0)),
                pl.BlockSpec((c_in, c_out), lambda i: (0, 0))],
      out_specs=[pl.BlockSpec((tile_n, c_out), lambda i: (i, 0)),
                 pl.BlockSpec((1, 2, c_out), lambda i: (i, 0, 0))],
      out_shape=(jax.ShapeDtypeStruct((n_pad, c_out), jnp.bfloat16),
                 jax.ShapeDtypeStruct((n_tiles, 2, c_out), jnp.float32)),
      compiler_params=_compiler_params(blk),
  )(x, w)


# ----- Kernel 2: KPConv (weighted neighbor reduce + P matmuls) + BN1 stats ---
def _kpconv_stats_kernel(xg_ref, infl_ref, wkp_ref, h1_ref, stats_ref,
                         *, n_valid, num_kpoints, num_neigh, c_mid):
  i = pl.program_id(0)
  tn = xg_ref.shape[0]
  acc = jnp.zeros((tn, c_mid), jnp.float32)
  for p in range(num_kpoints):                       # static unroll (P small)
    # Influence-weighted neighborhood feature for kernel point p.
    part = jnp.zeros((tn, c_mid), jnp.float32)
    for k in range(num_neigh):
      w = infl_ref[:, pl.ds(k * num_kpoints + p, 1)]            # [TN, 1] f32
      part = part + w * xg_ref[:, pl.ds(k * c_mid, c_mid)].astype(jnp.float32)
    # Accumulate P depth-C bf16 matmuls -- no [TN, P*C] concat to spill.
    acc = acc + jnp.dot(part.astype(jnp.bfloat16), wkp_ref[p],
                        preferred_element_type=jnp.float32)
  h1_ref[...] = acc.astype(h1_ref.dtype)
  stats_ref[...] = _masked_stats(acc, i * tn, n_valid)[None]


def kpconv_stats(xg, infl, wkp, n_valid, tile_n):
  n_pad, kc = xg.shape
  p, c, _ = wkp.shape
  kp_pad = infl.shape[1]
  n_tiles = n_pad // tile_n
  blk = (tile_n * kc * 2 + tile_n * kp_pad * 4 + p * c * c * 2
         + tile_n * c * 2 + 2 * c * 4)
  kernel = functools.partial(_kpconv_stats_kernel, n_valid=n_valid,
                             num_kpoints=p, num_neigh=kc // c, c_mid=c)
  return pl.pallas_call(
      kernel,
      grid=(n_tiles,),
      in_specs=[pl.BlockSpec((tile_n, kc), lambda i: (i, 0)),
                pl.BlockSpec((tile_n, kp_pad), lambda i: (i, 0)),
                pl.BlockSpec((p, c, c), lambda i: (0, 0, 0))],
      out_specs=[pl.BlockSpec((tile_n, c), lambda i: (i, 0)),
                 pl.BlockSpec((1, 2, c), lambda i: (i, 0, 0))],
      out_shape=(jax.ShapeDtypeStruct((n_pad, c), jnp.bfloat16),
                 jax.ShapeDtypeStruct((n_tiles, 2, c), jnp.float32)),
      compiler_params=_compiler_params(blk),
  )(xg, infl, wkp)


# ------- Kernel 3: BN1+LeakyReLU fused with uconv1 matmul + BN2 stats --------
def _bn_matmul_stats_kernel(h_ref, scale_ref, shift_ref, w_ref,
                            o_ref, stats_ref, *, n_valid):
  i = pl.program_id(0)
  x = _lrelu(h_ref[...].astype(jnp.float32) * scale_ref[...] + shift_ref[...])
  h2 = jnp.dot(x.astype(jnp.bfloat16), w_ref[...],
               preferred_element_type=jnp.float32)
  o_ref[...] = h2.astype(o_ref.dtype)
  stats_ref[...] = _masked_stats(h2, i * h2.shape[0], n_valid)[None]


def bn_matmul_stats(h, scale, shift, w, n_valid, tile_n):
  n_pad, c_in = h.shape
  c_out = w.shape[1]
  n_tiles = n_pad // tile_n
  blk = (tile_n * c_in * 2 + 2 * c_in * 4 + c_in * c_out * 2
         + tile_n * c_out * 2 + 2 * c_out * 4)
  kernel = functools.partial(_bn_matmul_stats_kernel, n_valid=n_valid)
  return pl.pallas_call(
      kernel,
      grid=(n_tiles,),
      in_specs=[pl.BlockSpec((tile_n, c_in), lambda i: (i, 0)),
                pl.BlockSpec((1, c_in), lambda i: (0, 0)),
                pl.BlockSpec((1, c_in), lambda i: (0, 0)),
                pl.BlockSpec((c_in, c_out), lambda i: (0, 0))],
      out_specs=[pl.BlockSpec((tile_n, c_out), lambda i: (i, 0)),
                 pl.BlockSpec((1, 2, c_out), lambda i: (i, 0, 0))],
      out_shape=(jax.ShapeDtypeStruct((n_pad, c_out), jnp.bfloat16),
                 jax.ShapeDtypeStruct((n_tiles, 2, c_out), jnp.float32)),
      compiler_params=_compiler_params(blk),
  )(h, scale, shift, w)


# ----- Kernel 4: BN2+LeakyReLU + shortcut UnaryConv + residual add -----------
def _bn_residual_kernel(h_ref, scale_ref, shift_ref, x_ref, wsc_ref, o_ref):
  act = _lrelu(h_ref[...].astype(jnp.float32) * scale_ref[...]
               + shift_ref[...])
  sc = jnp.dot(x_ref[...], wsc_ref[...], preferred_element_type=jnp.float32)
  o_ref[...] = act + sc


def bn_residual(h, scale, shift, x, wsc, tile_n):
  n_pad, c_out = h.shape
  c_in = x.shape[1]
  n_tiles = n_pad // tile_n
  blk = (tile_n * c_out * 2 + 2 * c_out * 4 + tile_n * c_in * 2
         + c_in * c_out * 2 + tile_n * c_out * 4)
  return pl.pallas_call(
      _bn_residual_kernel,
      grid=(n_tiles,),
      in_specs=[pl.BlockSpec((tile_n, c_out), lambda i: (i, 0)),
                pl.BlockSpec((1, c_out), lambda i: (0, 0)),
                pl.BlockSpec((1, c_out), lambda i: (0, 0)),
                pl.BlockSpec((tile_n, c_in), lambda i: (i, 0)),
                pl.BlockSpec((c_in, c_out), lambda i: (0, 0))],
      out_specs=pl.BlockSpec((tile_n, c_out), lambda i: (i, 0)),
      out_shape=jax.ShapeDtypeStruct((n_pad, c_out), jnp.float32),
      compiler_params=_compiler_params(blk),
  )(h, scale, shift, x, wsc)


# ------------------------------ full block -----------------------------------
def resnet_bottleneck_block(x, points, neighbors, params, kernel_points,
                            sigma, *, tile_n=None):
  """ResnetBottleNeckBlock forward (is_strided=False, BN in training mode).

  tile_n: rows per grid step (defaults to 512 on v5e/v6e, 256 on v7x); every
  pallas_call also sets an explicit vmem_limit_bytes derived from its blocks.
  """
  n, c_in = x.shape
  k = neighbors.shape[1]
  c_mid = params["w0"].shape[1]
  c_out = params["w1"].shape[1]
  p = kernel_points.shape[0]
  if tile_n is None:
    tile_n = _default_tile_n()
  tile_n = max(8, min(tile_n, _round_up(n, 8)))

  # Pad channels to 128 lanes (lane-dense stores) and rows to the tile size.
  c_in_p = _round_up(c_in, LANE)
  c_mid_p = _round_up(c_mid, LANE)
  c_out_p = _round_up(c_out, LANE)
  kp_pad = _round_up(k * p, LANE)
  n_pad = _round_up(n, tile_n)

  f32, bf16 = jnp.float32, jnp.bfloat16

  # bf16 weights / features on the MXU and in HBM; f32 stats and BN math.
  x_p = _pad2d(x, n_pad, c_in_p).astype(bf16)
  w0_p = _pad2d(params["w0"], c_in_p, c_mid_p).astype(bf16)
  w1_p = _pad2d(params["w1"], c_mid_p, c_out_p).astype(bf16)
  wsc_p = _pad2d(params["w_sc"], c_in_p, c_out_p).astype(bf16)
  wkp_p = jnp.pad(params["w_kp"],
                  ((0, 0), (0, c_mid_p - c_mid), (0, c_mid_p - c_mid))
                  ).astype(bf16)
  g0 = _pad2d(params["g0"], 1, c_mid_p, 1.0)
  b0 = _pad2d(params["b0"], 1, c_mid_p, 0.0)
  g1 = _pad2d(params["g1"], 1, c_mid_p, 1.0)
  b1 = _pad2d(params["b1"], 1, c_mid_p, 0.0)
  g2 = _pad2d(params["g2"], 1, c_out_p, 1.0)
  b2 = _pad2d(params["b2"], 1, c_out_p, 0.0)

  # Stage 0: uconv0 matmul + per-tile BN0 batch-stat partials.
  h0, stats0 = matmul_stats(x_p, w0_p, n, tile_n)
  scale0, shift0 = _bn_scale_shift(stats0, g0, b0, n)

  # BN0 + LeakyReLU ONCE per point, then gather (fused by XLA); bf16 halves
  # the bytes of the dominant [N, K, C_mid] gathered tensor, which is stored
  # lane-dense as [N, K*C_mid_p].
  # TODO(synk): fusing the gather itself needs scalar-prefetched neighbor
  # indices + per-row pltpu.make_async_copy (memory_space=pl.ANY); kept in XLA.
  x0 = _lrelu(h0[:n].astype(f32) * scale0 + shift0).astype(bf16)
  xg = x0[neighbors].reshape(n, k * c_mid_p)
  xg_p = _pad2d(xg, n_pad, k * c_mid_p)

  # Kernel-point influences precomputed in JAX, packed lane-dense [N, K*P]
  # (replaces the lane-sparse [N, K, 3] rel block in VMEM).
  rel = points[neighbors] - points[:, None, :]                    # [N, K, 3]
  dist = jnp.sqrt(jnp.sum(
      (rel[:, :, None, :] - kernel_points[None, None, :, :]) ** 2, axis=-1))
  infl = jnp.maximum(0.0, 1.0 - dist / sigma)                     # [N, K, P]
  infl_p = _pad2d(infl.reshape(n, k * p), n_pad, kp_pad)          # f32

  # Stage 1: KPConv (influence-weighted neighborhood reduce + P accumulated
  # depth-C matmuls) + per-tile BN1 partials.
  h1, stats1 = kpconv_stats(xg_p, infl_p, wkp_p, n, tile_n)
  scale1, shift1 = _bn_scale_shift(stats1, g1, b1, n)

  # Stage 2: BN1+LeakyReLU fused with uconv1 matmul + per-tile BN2 partials.
  h2, stats2 = bn_matmul_stats(h1, scale1, shift1, w1_p, n, tile_n)
  scale2, shift2 = _bn_scale_shift(stats2, g2, b2, n)

  # Stage 3: BN2+LeakyReLU + shortcut UnaryConv + residual add (f32 output).
  out_p = bn_residual(h2, scale2, shift2, x_p, wsc_p, tile_n)
  return out_p[:n, :c_out]


# --------------------------- pure-JAX reference -------------------------------
def reference(x, points, neighbors, params, kernel_points, sigma):
  def bn_lrelu(h, g, b):
    m = h.mean(0, keepdims=True)
    v = ((h - m) ** 2).mean(0, keepdims=True)
    hn = (h - m) / jnp.sqrt(v + BN_EPS) * g + b
    return jnp.where(hn >= 0, hn, NEG_SLOPE * hn)

  x0 = bn_lrelu(x @ params["w0"], params["g0"], params["b0"])
  xg = x0[neighbors]
  rel = points[neighbors] - points[:, None, :]
  dist = jnp.linalg.norm(
      rel[:, :, None, :] - kernel_points[None, None, :, :], axis=-1)
  infl = jnp.maximum(0.0, 1.0 - dist / sigma)
  h = jnp.einsum("nkp,nkc,pcd->nd", infl, xg, params["w_kp"])
  x1 = bn_lrelu(h, params["g1"], params["b1"])
  x2 = bn_lrelu(x1 @ params["w1"], params["g2"], params["b2"])
  return x2 + x @ params["w_sc"]


if __name__ == "__main__":
  # N deliberately NOT a multiple of 8 so the row-masking path is exercised.
  N, C_IN, C_OUT, K, P, SIGMA = 237, 16, 32, 8, 5, 1.0
  C_MID = C_OUT // 4

  keys = jax.random.split(jax.random.PRNGKey(0), 14)
  x = jax.random.normal(keys[0], (N, C_IN), jnp.float32)
  points = jax.random.uniform(keys[1], (N, 3), jnp.float32)
  neighbors = jax.random.randint(keys[2], (N, K), 0, N)
  kernel_points = 0.5 * jax.random.normal(keys[3], (P, 3), jnp.float32)

  params = {
      # UnaryConv weights (bias-free linear layers)
      "w0": 0.3 * jax.random.normal(keys[4], (C_IN, C_MID), jnp.float32),
      "w_kp": 0.3 * jax.random.normal(keys[5], (P, C_MID, C_MID), jnp.float32),
      "w1": 0.3 * jax.random.normal(keys[6], (C_MID, C_OUT), jnp.float32),
      "w_sc": 0.3 * jax.random.normal(keys[7], (C_IN, C_OUT), jnp.float32),
      # BatchNorm affine params (gamma/beta), kept as [1, C] for 2D TPU layout
      "g0": 1.0 + 0.1 * jax.random.normal(keys[8], (1, C_MID), jnp.float32),
      "b0": 0.1 * jax.random.normal(keys[9], (1, C_MID), jnp.float32),
      "g1": 1.0 + 0.1 * jax.random.normal(keys[10], (1, C_MID), jnp.float32),
      "b1": 0.1 * jax.random.normal(keys[11], (1, C_MID), jnp.float32),
      "g2": 1.0 + 0.1 * jax.random.normal(keys[12], (1, C_OUT), jnp.float32),
      "b2": 0.1 * jax.random.normal(keys[13], (1, C_OUT), jnp.float32),
  }

  out = resnet_bottleneck_block(x, points, neighbors, params,
                                kernel_points, SIGMA)
  out = jax.block_until_ready(out)

  ref = reference(x, points, neighbors, params, kernel_points, SIGMA)
  assert out.shape == (N, C_OUT) and out.dtype == jnp.float32
  # bf16 MXU operands: check normalized max-abs error at a bf16-level bound.
  err = float(jnp.max(jnp.abs(out - ref))
              / jnp.maximum(jnp.max(jnp.abs(ref)), 1e-6))
  assert err < 3e-2, f"mismatch vs reference: normalized max err {err:.4f}"
  print("KERNEL_OK")
</pallas_src>

<mosaic_0001>
module attributes {stable_mosaic.version = 11 : i64} {
  func.func @_matmul_stats_kernel(%arg0: i32, %arg1: memref<240x128xbf16, #tpu.memory_space<vmem>>, %arg2: memref<128x128xbf16, #tpu.memory_space<vmem>>, %arg3: memref<240x128xbf16, #tpu.memory_space<vmem>>, %arg4: memref<1x2x128xf32, #tpu.memory_space<vmem>>) attributes {dimension_semantics = [#tpu.dimension_semantics<parallel>], iteration_bounds = array<i64: 1>, scalar_prefetch = 0 : i64, scratch_operands = 0 : i64, tpu.core_type = #tpu.core_type<tc>, window_params = [{transform_indices = @transform_0, window_bounds = array<i64: 240, 128>}, {pipeline_mode = #tpu.pipeline_mode<synchronous>, transform_indices = @transform_1, window_bounds = array<i64: 128, 128>}, {transform_indices = @transform_2, window_bounds = array<i64: 240, 128>}, {transform_indices = @transform_3, window_bounds = array<i64: 1, 2, 128>}]} {
    %c0 = arith.constant 0 : index
    %c0_0 = arith.constant 0 : index
    %0 = vector.load %arg1[%c0, %c0_0] : memref<240x128xbf16, #tpu.memory_space<vmem>>, vector<240x128xbf16>
    %c0_1 = arith.constant 0 : index
    %c0_2 = arith.constant 0 : index
    %1 = vector.load %arg2[%c0_1, %c0_2] : memref<128x128xbf16, #tpu.memory_space<vmem>>, vector<128x128xbf16>
    %cst = arith.constant dense<0.000000e+00> : vector<240x128xf32>
    %2 = tpu.matmul %0, %1, %cst {dimension_numbers = #tpu.dot_dimension_numbers<[1], [0], [0], [1], [0, 0, 1, 1], [], []>} : vector<240x128xbf16>, vector<128x128xbf16>, vector<240x128xf32> -> vector<240x128xf32>
    %3 = arith.truncf %2 : vector<240x128xf32> to vector<240x128xbf16>
    %c0_3 = arith.constant 0 : index
    %c0_4 = arith.constant 0 : index
    %4 = vector.load %arg3[%c0_3, %c0_4] : memref<240x128xbf16, #tpu.memory_space<vmem>>, vector<240x128xbf16>
    tpu.vector_store %arg3[%c0_3, %c0_4], %3 {strides = array<i32>} : memref<240x128xbf16, #tpu.memory_space<vmem>>, vector<240x128xbf16>,
    %c240_i32 = arith.constant 240 : i32
    %5 = arith.muli %arg0, %c240_i32 : i32
    %6 = tpu.iota {dimensions = array<i32: 0>} : vector<240x1xi32>
    %7 = vector.broadcast %5 : i32 to vector<240x1xi32>
    %8 = arith.addi %7, %6 : vector<240x1xi32>
    %c237_i32 = arith.constant 237 : i32
    %9 = vector.broadcast %c237_i32 : i32 to vector<240x1xi32>
    %10 = arith.cmpi slt, %8, %9 : vector<240x1xi32>
    %cst_5 = arith.constant 0.000000e+00 : f32
    %11 = vector.shape_cast %10 : vector<240x1xi1> to vector<240x1xi1>
    %12 = vector.broadcast %11 : vector<240x1xi1> to vector<240x128xi1>
    %13 = vector.broadcast %cst_5 : f32 to vector<240x128xf32>
    %14 = arith.select %12, %2, %13 : vector<240x128xi1>, vector<240x128xf32>
    %cst_6 = arith.constant dense<0.000000e+00> : vector<128xf32>
    %15 = vector.multi_reduction <add>, %14, %cst_6 [0] : vector<240x128xf32> to vector<128xf32>
    %16 = vector.shape_cast %15 : vector<128xf32> to vector<1x128xf32>
    %17 = arith.mulf %14, %14 : vector<240x128xf32>
    %cst_7 = arith.constant dense<0.000000e+00> : vector<128xf32>
    %18 = vector.multi_reduction <add>, %17, %cst_7 [0] : vector<240x128xf32> to vector<128xf32>
    %19 = vector.shape_cast %18 : vector<128xf32> to vector<1x128xf32>
    %20 = tpu.concatenate %16, %19 in 0 : vector<1x128xf32>, vector<1x128xf32> -> vector<2x128xf32>
    %21 = vector.shape_cast %20 : vector<2x128xf32> to vector<1x2x128xf32>
    %c0_8 = arith.constant 0 : index
    %c0_9 = arith.constant 0 : index
    %c0_10 = arith.constant 0 : index
    %22 = vector.load %arg4[%c0_8, %c0_9, %c0_10] : memref<1x2x128xf32, #tpu.memory_space<vmem>>, vector<1x2x128xf32>
    tpu.vector_store %arg4[%c0_8, %c0_9, %c0_10], %21 {strides = array<i32>} : memref<1x2x128xf32, #tpu.memory_space<vmem>>, vector<1x2x128xf32>,
    return
  }
  func.func @transform_0(%arg0: i32) -> (i32, i32) {
    %c0_i32 = arith.constant 0 : i32
    %c0_i32_0 = arith.constant 0 : i32
    return %arg0, %c0_i32 : i32, i32
  }
  func.func @transform_1(%arg0: i32) -> (i32, i32) {
    %c0_i32 = arith.constant 0 : i32
    %c0_i32_0 = arith.constant 0 : i32
    %c0_i32_1 = arith.constant 0 : i32
    return %c0_i32, %c0_i32_0 : i32, i32
  }
  func.func @transform_2(%arg0: i32) -> (i32, i32) {
    %c0_i32 = arith.constant 0 : i32
    %c0_i32_0 = arith.constant 0 : i32
    return %arg0, %c0_i32 : i32, i32
  }
  func.func @transform_3(%arg0: i32) -> (i32, i32, i32) {
    %c0_i32 = arith.constant 0 : i32
    %c0_i32_0 = arith.constant 0 : i32
    %c0_i32_1 = arith.constant 0 : i32
    return %arg0, %c0_i32, %c0_i32_0 : i32, i32, i32
  }
}

</mosaic_0001>

<llo_original>
// kernel: tpu_custom_call.1
$region0: #{tpu_custom_call.1}
  #allocation0 [shape = 'u32[]', space=smem, size = 0x4, offset = 0x4, fixed_abs, tag = 'smem constant byte address 0x4 - core index']
  #allocation1 [shape = 'u32[144,128]{1,0:T(1,128)}', space=vmem, size = 0x12000, scoped, tag = 'internal scratch']
  %s0 = inlined_call_operand.hbm [shape: bf16[240,128], index: 0, kind: input, shape index: {}]
  %s1 = inlined_call_operand.hbm [shape: bf16[128,128], index: 1, kind: input, shape index: {}]
  %s2 = inlined_call_operand.hbm [shape: bf16[240,128], index: 2, kind: output, shape index: {0}]
  %s3 = inlined_call_operand.hbm [shape: f32[1,2,128], index: 3, kind: output, shape index: {1}]
  %4 = xla_tuple %s2, %s3
  %s5 = sld [smem:[#allocation0]]
  $region34: #{tpu_custom_call.1} parent=0
    _
  %s7 = ssub.s32 1, %s5
  %s8 = scalar_select 0, %s7, %s5
  $region1: #{tpu_custom_call.1} parent=0
    #allocation2 [shape = 'u8[61440]{0}', space=vmem, size = 0xf000, scoped, tag = 'input window, operand 0, single buffered']
    #allocation3 [shape = 's32[1]{0}', space=sflag, size = 0x4, scoped, tag = 'scoped memory for tpu_custom_call.1']
    #allocation4 [shape = 's32[1]{0}', space=sflag, size = 0x4, scoped, tag = 'scoped memory for tpu_custom_call.1']
    #allocation5 [shape = 'u8[32768]{0}', space=vmem, size = 0x8000, scoped, tag = 'input window, operand 1, single buffered']
    #allocation6 [shape = 's32[1]{0}', space=sflag, size = 0x4, scoped, tag = 'scoped memory for tpu_custom_call.1']
    #allocation7 [shape = 'u8[61440]{0}', space=vmem, size = 0xf000, scoped, tag = 'output window, operand 0, single buffered']
    #allocation8 [shape = 'u8[1024]{0}', space=vmem, size = 0x400, scoped, tag = 'output window, operand 1, single buffered']
    #allocation9 [shape = 's32[1]{0}', space=sflag, size = 0x4, scoped, tag = 'scoped memory for tpu_custom_call.1']
    %9 = vsyncpa [#allocation3], 0
    %10 = vsyncpa [#allocation6], 0
    %11 = vsyncpa [#allocation4], 0
    %12 = vsyncpa [#allocation9], 0
    // Predicated region
    $region2: #{tpu_custom_call.1} parent=1 // pred_check
      _
    $region3: #{tpu_custom_call.1} parent=1 // pred_check_branch
      %14 = sbr.rel (0) target = $region5
    $region4: #{tpu_custom_call.1} parent=1 // pred_region
      %s16 = ssub.s32 1920, 1920
      %17 = vsyncadd [#allocation3], %s16
      %s18 = sshll.u32 [#allocation2], 4
      %s19 = int_to_ptr.vmem [resolvable:$true] %s18
      %24 = dma.hbm_to_vmem [thread:$0]  %s0, 1920, %s19, [#allocation3], 64, 64, 4
    $region5: #{tpu_custom_call.1} parent=1 // pred_fallthru
      _
    // Predicated region
    $region6: #{tpu_custom_call.1} parent=1 // pred_check
      _
    $region7: #{tpu_custom_call.1} parent=1 // pred_check_branch
      %26 = sbr.rel (0) target = $region9
    $region8: #{tpu_custom_call.1} parent=1 // pred_region
      %s28 = ssub.s32 1024, 1024
      %29 = vsyncadd [#allocation6], %s28
      %s30 = sshll.u32 [#allocation5], 4
      %s31 = int_to_ptr.vmem [resolvable:$true] %s30
      %36 = dma.hbm_to_vmem [thread:$0]  %s1, 1024, %s31, [#allocation6], 64, 64, 4
    $region9: #{tpu_custom_call.1} parent=1 // pred_fallthru
      _
    // Predicated region
    $region10: #{tpu_custom_call.1} parent=1 // pred_check
      _
    $region11: #{tpu_custom_call.1} parent=1 // pred_check_branch
      %38 = sbr.rel (0) target = $region13
    $region12: #{tpu_custom_call.1} parent=1 // pred_region
      %39 = dma.done [#allocation3], 1920
    $region13: #{tpu_custom_call.1} parent=1 // pred_fallthru
      _
    // Predicated region
    $region14: #{tpu_custom_call.1} parent=1 // pred_check
      _
    $region15: #{tpu_custom_call.1} parent=1 // pred_check_branch
      %41 = sbr.rel (0) target = $region17
    $region16: #{tpu_custom_call.1} parent=1 // pred_region
      %42 = dma.done [#allocation6], 1024
    $region17: #{tpu_custom_call.1} parent=1 // pred_fallthru
      _
    %v44 = vld [vmem:[#allocation2] sm:$0xf]
    %v45 = vld [vmem:[#allocation2 + $0x4] sm:$0xf]
    %v46 = vld [vmem:[#allocation2 + $0x8] sm:$0xf]
    %v47 = vld [vmem:[#allocation2 + $0xc] sm:$0xf]
    %v48 = vld [vmem:[#allocation2 + $0x10] sm:$0xf]
    %v49 = vld [vmem:[#allocation2 + $0x14] sm:$0xf]
    %v50 = vld [vmem:[#allocation2 + $0x18] sm:$0xf]
    %v51 = vld [vmem:[#allocation2 + $0x1c] sm:$0xf]
    %v52 = vld [vmem:[#allocation2 + $0x20] sm:$0xf]
    %v53 = vld [vmem:[#allocation2 + $0x24] sm:$0xf]
    %v54 = vld [vmem:[#allocation2 + $0x28] sm:$0xf]
    %v55 = vld [vmem:[#allocation2 + $0x2c] sm:$0xf]
    %v56 = vld [vmem:[#allocation2 + $0x30] sm:$0xf]
    %v57 = vld [vmem:[#allocation2 + $0x34] sm:$0xf]
    %v58 = vld [vmem:[#allocation2 + $0x38] sm:$0xf]
    %v59 = vld [vmem:[#allocation2 + $0x3c] sm:$0xf]
    %v60 = vld [vmem:[#allocation2 + $0x40] sm:$0xf]
    %v61 = vld [vmem:[#allocation2 + $0x44] sm:$0xf]
    %v62 = vld [vmem:[#allocation2 + $0x48] sm:$0xf]
    %v63 = vld [vmem:[#allocation2 + $0x4c] sm:$0xf]
    %v64 = vld [vmem:[#allocation2 + $0x50] sm:$0xf]
    %v65 = vld [vmem:[#allocation2 + $0x54] sm:$0xf]
    %v66 = vld [vmem:[#allocation2 + $0x58] sm:$0xf]
    %v67 = vld [vmem:[#allocation2 + $0x5c] sm:$0xf]
    %v68 = vld [vmem:[#allocation2 + $0x60] sm:$0xf]
    %v69 = vld [vmem:[#allocation2 + $0x64] sm:$0xf]
    %v70 = vld [vmem:[#allocation2 + $0x68] sm:$0xf]
    %v71 = vld [vmem:[#allocation2 + $0x6c] sm:$0xf]
    %v72 = vld [vmem:[#allocation2 + $0x70] sm:$0xf]
    %v73 = vld [vmem:[#allocation2 + $0x74] sm:$0xf]
    %v74 = vld [vmem:[#allocation5] sm:$0xf]
    %v75 = vld [vmem:[#allocation5 + $0x4] sm:$0xf]
    %v76 = vld [vmem:[#allocation5 + $0x8] sm:$0xf]
    %v77 = vld [vmem:[#allocation5 + $0xc] sm:$0xf]
    %v78 = vld [vmem:[#allocation5 + $0x10] sm:$0xf]
    %v79 = vld [vmem:[#allocation5 + $0x14] sm:$0xf]
    %v80 = vld [vmem:[#allocation5 + $0x18] sm:$0xf]
    %v81 = vld [vmem:[#allocation5 + $0x1c] sm:$0xf]
    %v82 = vld [vmem:[#allocation5 + $0x20] sm:$0xf]
    %v83 = vld [vmem:[#allocation5 + $0x24] sm:$0xf]
    %v84 = vld [vmem:[#allocation5 + $0x28] sm:$0xf]
    %v85 = vld [vmem:[#allocation5 + $0x2c] sm:$0xf]
    %v86 = vld [vmem:[#allocation5 + $0x30] sm:$0xf]
    %v87 = vld [vmem:[#allocation5 + $0x34] sm:$0xf]
    %v88 = vld [vmem:[#allocation5 + $0x38] sm:$0xf]
    %v89 = vld [vmem:[#allocation5 + $0x3c] sm:$0xf]
    %v120 = vunpack.c.l.b16 %v44
    %v121 = vunpack.c.l.b16 %v45
    %v122 = vunpack.c.l.b16 %v46
    %v123 = vunpack.c.l.b16 %v47
    %v124 = vunpack.c.l.b16 %v48
    %v125 = vunpack.c.l.b16 %v49
    %v126 = vunpack.c.l.b16 %v50
    %v127 = vunpack.c.l.b16 %v51
    %v128 = vunpack.c.l.b16 %v52
    %v129 = vunpack.c.l.b16 %v53
    %v130 = vunpack.c.l.b16 %v54
    %v131 = vunpack.c.l.b16 %v55
    %v132 = vunpack.c.l.b16 %v56
    %v133 = vunpack.c.l.b16 %v57
    %v134 = vunpack.c.l.b16 %v58
    %v135 = vunpack.c.l.b16 %v59
    %v136 = vunpack.c.l.b16 %v60
    %v137 = vunpack.c.l.b16 %v61
    %v138 = vunpack.c.l.b16 %v62
    %v139 = vunpack.c.l.b16 %v63
    %v140 = vunpack.c.l.b16 %v64
    %v141 = vunpack.c.l.b16 %v65
    %v142 = vunpack.c.l.b16 %v66
    %v143 = vunpack.c.l.b16 %v67
    %v144 = vunpack.c.l.b16 %v68
    %v145 = vunpack.c.l.b16 %v69
    %v146 = vunpack.c.l.b16 %v70
    %v147 = vunpack.c.l.b16 %v71
    %v148 = vunpack.c.l.b16 %v72
    %v149 = vunpack.c.l.b16 %v73
    %v150 = vpack.c.b16 %v121, %v120
    %v151 = vpack.c.b16 %v123, %v122
    %v152 = vpack.c.b16 %v125, %v124
    %v153 = vpack.c.b16 %v127, %v126
    %v154 = vpack.c.b16 %v129, %v128
    %v155 = vpack.c.b16 %v131, %v130
    %v156 = vpack.c.b16 %v133, %v132
    %v157 = vpack.c.b16 %v135, %v134
    %v158 = vpack.c.b16 %v137, %v136
    %v159 = vpack.c.b16 %v139, %v138
    %v160 = vpack.c.b16 %v141, %v140
    %v161 = vpack.c.b16 %v143, %v142
    %v162 = vpack.c.b16 %v145, %v144
    %v163 = vpack.c.b16 %v147, %v146
    %v164 = vpack.c.b16 %v149, %v148
    %v196 = vunpack.c.l.b16 %v74
    %v197 = vunpack.c.l.b16 %v75
    %v198 = vunpack.c.l.b16 %v76
    %v199 = vunpack.c.l.b16 %v77
    %v200 = vunpack.c.l.b16 %v78
    %v201 = vunpack.c.l.b16 %v79
    %v202 = vunpack.c.l.b16 %v80
    %v203 = vunpack.c.l.b16 %v81
    %v204 = vunpack.c.l.b16 %v82
    %v205 = vunpack.c.l.b16 %v83
    %v206 = vunpack.c.l.b16 %v84
    %v207 = vunpack.c.l.b16 %v85
    %v208 = vunpack.c.l.b16 %v86
    %v209 = vunpack.c.l.b16 %v87
    %v210 = vunpack.c.l.b16 %v88
    %v211 = vunpack.c.l.b16 %v89
    %v212 = vpack.c.b16 %v197, %v196
    %v213 = vpack.c.b16 %v199, %v198
    %v214 = vpack.c.b16 %v201, %v200
    %v215 = vpack.c.b16 %v203, %v202
    %v216 = vpack.c.b16 %v205, %v204
    %v217 = vpack.c.b16 %v207, %v206
    %v218 = vpack.c.b16 %v209, %v208
    %v219 = vpack.c.b16 %v211, %v210
    %228 = vmatprep.subr.bf16.mxu0 0
    %229 = vmatpush1.bf16.msra.mxu0 %v212
    %230 = vmatprep.subr.bf16.mxu0 0
    %231 = vmatpush1.bf16.msra.mxu0 %v213
    %232 = vmatprep.subr.bf16.mxu0 0
    %233 = vmatpush1.bf16.msra.mxu0 %v214
    %234 = vmatprep.subr.bf16.mxu0 0
    %235 = vmatpush1.bf16.msra.mxu0 %v215
    %236 = vmatprep.subr.bf16.mxu0 0
    %237 = vmatpush1.bf16.msra.mxu0 %v216
    %238 = vmatprep.subr.bf16.mxu0 0
    %239 = vmatpush1.bf16.msra.mxu0 %v217
    %240 = vmatprep.subr.bf16.mxu0 0
    %241 = vmatpush1.bf16.msra.mxu0 %v218
    %242 = vmatprep.subr.bf16.mxu0 0
    %243 = vmatpush1.bf16.msra.mxu0 %v219
    %244 = vmatprep.subr.bf16.mxu0 0
    %245 = vmatpush1.bf16.msra.mxu0 0
    %246 = vmatprep.subr.bf16.mxu0 0
    %247 = vmatpush1.bf16.msra.mxu0 0
    %248 = vmatprep.subr.bf16.mxu0 0
    %249 = vmatpush1.bf16.msra.mxu0 0
    %250 = vmatprep.subr.bf16.mxu0 0
    %251 = vmatpush1.bf16.msra.mxu0 0
    %252 = vmatprep.subr.bf16.mxu0 0
    %253 = vmatpush1.bf16.msra.mxu0 0
    %254 = vmatprep.subr.bf16.mxu0 0
    %255 = vmatpush1.bf16.msra.mxu0 0
    %256 = vmatprep.subr.bf16.mxu0 0
    %257 = vmatpush1.bf16.msra.mxu0 0
    %258 = vmatprep.subr.bf16.mxu0 0
    %259 = vmatpush1.bf16.msra.mxu0 0
    %260 = vmatprep.mubr.bf16.mxu0 0
    %261 = vmatmul.mubr.bf16.gmra.mrb[0].mxu0 %v150
    %v262 = vpop.f32.mrb[0].mxu0
    %v263 = vadd.f32 0.0, %v262
    %v264 = vpop.f32.mrb[0].mxu0
    %v265 = vpop.f32.mrb[0].mxu0
    %v266 = vadd.f32 0.0, %v265
    %v267 = vpop.f32.mrb[0].mxu0
    %268 = vmatprep.mubr.bf16.mxu0 0
    %269 = vmatmul.mubr.bf16.gmra.mrb[0].mxu0 %v151
    %v270 = vpop.f32.mrb[0].mxu0
    %v271 = vadd.f32 0.0, %v270
    %v272 = vpop.f32.mrb[0].mxu0
    %v273 = vpop.f32.mrb[0].mxu0
    %v274 = vadd.f32 0.0, %v273
    %v275 = vpop.f32.mrb[0].mxu0
    %276 = vmatprep.mubr.bf16.mxu0 0
    %277 = vmatmul.mubr.bf16.gmra.mrb[0].mxu0 %v152
    %v278 = vpop.f32.mrb[0].mxu0
    %v279 = vadd.f32 0.0, %v278
    %v280 = vpop.f32.mrb[0].mxu0
    %v281 = vpop.f32.mrb[0].mxu0
    %v282 = vadd.f32 0.0, %v281
    %v283 = vpop.f32.mrb[0].mxu0
    %284 = vmatprep.mubr.bf16.mxu0 0
    %285 = vmatmul.mubr.bf16.gmra.mrb[0].mxu0 %v153
    %v286 = vpop.f32.mrb[0].mxu0
    %v287 = vadd.f32 0.0, %v286
    %v288 = vpop.f32.mrb[0].mxu0
    %v289 = vpop.f32.mrb[0].mxu0
    %v290 = vadd.f32 0.0, %v289
    %v291 = vpop.f32.mrb[0].mxu0
    %292 = vmatprep.mubr.bf16.mxu0 0
    %293 = vmatmul.mubr.bf16.gmra.mrb[0].mxu0 %v154
    %v294 = vpop.f32.mrb[0].mxu0
    %v295 = vadd.f32 0.0, %v294
    %v296 = vpop.f32.mrb[0].mxu0
    %v297 = vpop.f32.mrb[0].mxu0
    %v298 = vadd.f32 0.0, %v297
    %v299 = vpop.f32.mrb[0].mxu0
    %300 = vmatprep.mubr.bf16.mxu0 0
    %301 = vmatmul.mubr.bf16.gmra.mrb[0].mxu0 %v155
    %v302 = vpop.f32.mrb[0].mxu0
    %v303 = vadd.f32 0.0, %v302
    %v304 = vpop.f32.mrb[0].mxu0
    %v305 = vpop.f32.mrb[0].mxu0
    %v306 = vadd.f32 0.0, %v305
    %v307 = vpop.f32.mrb[0].mxu0
    %308 = vmatprep.mubr.bf16.mxu0 0
    %309 = vmatmul.mubr.bf16.gmra.mrb[0].mxu0 %v156
    %v310 = vpop.f32.mrb[0].mxu0
    %v311 = vadd.f32 0.0, %v310
    %v312 = vpop.f32.mrb[0].mxu0
    %v313 = vpop.f32.mrb[0].mxu0
    %v314 = vadd.f32 0.0, %v313
    %v315 = vpop.f32.mrb[0].mxu0
    %316 = vmatprep.mubr.bf16.mxu0 0
    %317 = vmatmul.mubr.bf16.gmra.mrb[0].mxu0 %v157
    %v318 = vpop.f32.mrb[0].mxu0
    %v319 = vadd.f32 0.0, %v318
    %v320 = vpop.f32.mrb[0].mxu0
    %v321 = vpop.f32.mrb[0].mxu0
    %v322 = vadd.f32 0.0, %v321
    %v323 = vpop.f32.mrb[0].mxu0
    %324 = vmatprep.mubr.bf16.mxu0 0
    %325 = vmatmul.mubr.bf16.gmra.mrb[0].mxu0 %v158
    %v326 = vpop.f32.mrb[0].mxu0
    %v327 = vadd.f32 0.0, %v326
    %v328 = vpop.f32.mrb[0].mxu0
    %v329 = vpop.f32.mrb[0].mxu0
    %v330 = vadd.f32 0.0, %v329
    %v331 = vpop.f32.mrb[0].mxu0
    %332 = vmatprep.mubr.bf16.mxu0 0
    %333 = vmatmul.mubr.bf16.gmra.mrb[0].mxu0 %v159
    %v334 = vpop.f32.mrb[0].mxu0
    %v335 = vadd.f32 0.0, %v334
    %v336 = vpop.f32.mrb[0].mxu0
    %v337 = vpop.f32.mrb[0].mxu0
    %v338 = vadd.f32 0.0, %v337
    %v339 = vpop.f32.mrb[0].mxu0
    %340 = vmatprep.mubr.bf16.mxu0 0
    %341 = vmatmul.mubr.bf16.gmra.mrb[0].mxu0 %v160
    %v342 = vpop.f32.mrb[0].mxu0
    %v343 = vadd.f32 0.0, %v342
    %v344 = vpop.f32.mrb[0].mxu0
    %v345 = vpop.f32.mrb[0].mxu0
    %v346 = vadd.f32 0.0, %v345
    %v347 = vpop.f32.mrb[0].mxu0
    %348 = vmatprep.mubr.bf16.mxu0 0
    %349 = vmatmul.mubr.bf16.gmra.mrb[0].mxu0 %v161
    %v350 = vpop.f32.mrb[0].mxu0
    %v351 = vadd.f32 0.0, %v350
    %v352 = vpop.f32.mrb[0].mxu0
    %v353 = vpop.f32.mrb[0].mxu0
    %v354 = vadd.f32 0.0, %v353
    %v355 = vpop.f32.mrb[0].mxu0
    %356 = vmatprep.mubr.bf16.mxu0 0
    %357 = vmatmul.mubr.bf16.gmra.mrb[0].mxu0 %v162
    %v358 = vpop.f32.mrb[0].mxu0
    %v359 = vadd.f32 0.0, %v358
    %v360 = vpop.f32.mrb[0].mxu0
    %v361 = vpop.f32.mrb[0].mxu0
    %v362 = vadd.f32 0.0, %v361
    %v363 = vpop.f32.mrb[0].mxu0
    %364 = vmatprep.mubr.bf16.mxu0 0
    %365 = vmatmul.mubr.bf16.gmra.mrb[0].mxu0 %v163
    %v366 = vpop.f32.mrb[0].mxu0
    %v367 = vadd.f32 0.0, %v366
    %v368 = vpop.f32.mrb[0].mxu0
    %v369 = vpop.f32.mrb[0].mxu0
    %v370 = vadd.f32 0.0, %v369
    %v371 = vpop.f32.mrb[0].mxu0
    %372 = vmatprep.mubr.bf16.mxu0 0
    %373 = vmatmul.mubr.bf16.gmra.mrb[0].mxu0 %v164
    %v374 = vpop.f32.mrb[0].mxu0
    %v375 = vadd.f32 0.0, %v374
    %v376 = vpop.f32.mrb[0].mxu0
    %v377 = vpop.f32.mrb[0].mxu0
    %v378 = vadd.f32 0.0, %v377
    %v379 = vpop.f32.mrb[0].mxu0
    %380 = vdwg.mxu0
    %v381 = vpack.c.bf16 %v266, %v263
    %v382 = vpack.c.bf16 %v274, %v271
    %v383 = vpack.c.bf16 %v282, %v279
    %v384 = vpack.c.bf16 %v290, %v287
    %v385 = vpack.c.bf16 %v298, %v295
    %v386 = vpack.c.bf16 %v306, %v303
    %v387 = vpack.c.bf16 %v314, %v311
    %v388 = vpack.c.bf16 %v322, %v319
    %v389 = vpack.c.bf16 %v330, %v327
    %v390 = vpack.c.bf16 %v338, %v335
    %v391 = vpack.c.bf16 %v346, %v343
    %v392 = vpack.c.bf16 %v354, %v351
    %v393 = vpack.c.bf16 %v362, %v359
    %v394 = vpack.c.bf16 %v370, %v367
    %v395 = vpack.c.bf16 %v378, %v375
    %v411 = vunpack.c.l.b16 %v381
    %v412 = vunpack.c.h.b16 %v381
    %v413 = vunpack.c.l.b16 %v382
    %v414 = vunpack.c.h.b16 %v382
    %v415 = vunpack.c.l.b16 %v383
    %v416 = vunpack.c.h.b16 %v383
    %v417 = vunpack.c.l.b16 %v384
    %v418 = vunpack.c.h.b16 %v384
    %v419 = vunpack.c.l.b16 %v385
    %v420 = vunpack.c.h.b16 %v385
    %v421 = vunpack.c.l.b16 %v386
    %v422 = vunpack.c.h.b16 %v386
    %v423 = vunpack.c.l.b16 %v387
    %v424 = vunpack.c.h.b16 %v387
    %v425 = vunpack.c.l.b16 %v388
    %v426 = vunpack.c.h.b16 %v388
    %v427 = vunpack.c.l.b16 %v389
    %v428 = vunpack.c.h.b16 %v389
    %v429 = vunpack.c.l.b16 %v390
    %v430 = vunpack.c.h.b16 %v390
    %v431 = vunpack.c.l.b16 %v391
    %v432 = vunpack.c.h.b16 %v391
    %v433 = vunpack.c.l.b16 %v392
    %v434 = vunpack.c.h.b16 %v392
    %v435 = vunpack.c.l.b16 %v393
    %v436 = vunpack.c.h.b16 %v393
    %v437 = vunpack.c.l.b16 %v394
    %v438 = vunpack.c.h.b16 %v394
    %v439 = vunpack.c.l.b16 %v395
    %v440 = vunpack.c.h.b16 %v395
    %v441 = vpack.c.b16 %v411, %v411
    %v442 = vpack.c.b16 %v412, %v412
    %v443 = vpack.c.b16 %v413, %v413
    %v444 = vpack.c.b16 %v414, %v414
    %v445 = vpack.c.b16 %v415, %v415
    %v446 = vpack.c.b16 %v416, %v416
    %v447 = vpack.c.b16 %v417, %v417
    %v448 = vpack.c.b16 %v418, %v418
    %v449 = vpack.c.b16 %v419, %v419
    %v450 = vpack.c.b16 %v420, %v420
    %v451 = vpack.c.b16 %v421, %v421
    %v452 = vpack.c.b16 %v422, %v422
    %v453 = vpack.c.b16 %v423, %v423
    %v454 = vpack.c.b16 %v424, %v424
    %v455 = vpack.c.b16 %v425, %v425
    %v456 = vpack.c.b16 %v426, %v426
    %v457 = vpack.c.b16 %v427, %v427
    %v458 = vpack.c.b16 %v428, %v428
    %v459 = vpack.c.b16 %v429, %v429
    %v460 = vpack.c.b16 %v430, %v430
    %v461 = vpack.c.b16 %v431, %v431
    %v462 = vpack.c.b16 %v432, %v432
    %v463 = vpack.c.b16 %v433, %v433
    %v464 = vpack.c.b16 %v434, %v434
    %v465 = vpack.c.b16 %v435, %v435
    %v466 = vpack.c.b16 %v436, %v436
    %v467 = vpack.c.b16 %v437, %v437
    %v468 = vpack.c.b16 %v438, %v438
    %v469 = vpack.c.b16 %v439, %v439
    %v470 = vpack.c.b16 %v440, %v440
    %501 = vst [vmem:[#allocation7] sm:$0xf] %v441
    %502 = vst [vmem:[#allocation7 + $0x4] sm:$0xf] %v442
    %503 = vst [vmem:[#allocation7 + $0x8] sm:$0xf] %v443
    %504 = vst [vmem:[#allocation7 + $0xc] sm:$0xf] %v444
    %505 = vst [vmem:[#allocation7 + $0x10] sm:$0xf] %v445
    %506 = vst [vmem:[#allocation7 + $0x14] sm:$0xf] %v446
    %507 = vst [vmem:[#allocation7 + $0x18] sm:$0xf] %v447
    %508 = vst [vmem:[#allocation7 + $0x1c] sm:$0xf] %v448
    %509 = vst [vmem:[#allocation7 + $0x20] sm:$0xf] %v449
    %510 = vst [vmem:[#allocation7 + $0x24] sm:$0xf] %v450
    %511 = vst [vmem:[#allocation7 + $0x28] sm:$0xf] %v451
    %512 = vst [vmem:[#allocation7 + $0x2c] sm:$0xf] %v452
    %513 = vst [vmem:[#allocation7 + $0x30] sm:$0xf] %v453
    %514 = vst [vmem:[#allocation7 + $0x34] sm:$0xf] %v454
    %515 = vst [vmem:[#allocation7 + $0x38] sm:$0xf] %v455
    %516 = vst [vmem:[#allocation7 + $0x3c] sm:$0xf] %v456
    %517 = vst [vmem:[#allocation7 + $0x40] sm:$0xf] %v457
    %518 = vst [vmem:[#allocation7 + $0x44] sm:$0xf] %v458
    %519 = vst [vmem:[#allocation7 + $0x48] sm:$0xf] %v459
    %520 = vst [vmem:[#allocation7 + $0x4c] sm:$0xf] %v460
    %521 = vst [vmem:[#allocation7 + $0x50] sm:$0xf] %v461
    %522 = vst [vmem:[#allocation7 + $0x54] sm:$0xf] %v462
    %523 = vst [vmem:[#allocation7 + $0x58] sm:$0xf] %v463
    %524 = vst [vmem:[#allocation7 + $0x5c] sm:$0xf] %v464
    %525 = vst [vmem:[#allocation7 + $0x60] sm:$0xf] %v465
    %526 = vst [vmem:[#allocation7 + $0x64] sm:$0xf] %v466
    %527 = vst [vmem:[#allocation7 + $0x68] sm:$0xf] %v467
    %528 = vst [vmem:[#allocation7 + $0x6c] sm:$0xf] %v468
    %529 = vst [vmem:[#allocation7 + $0x70] sm:$0xf] %v469
    %530 = vst [vmem:[#allocation7 + $0x74] sm:$0xf] %v470
    %s531 = smul.u32 0, 240
    %v532 = vlaneseq
    %v533 = vshrl.u32 %v532, 7
    %v534 = vadd.s32 %v533, 8
    %v535 = vadd.s32 %v533, 16
    %v536 = vadd.s32 %v533, 24
    %v537 = vadd.s32 %v533, 32
    %v538 = vadd.s32 %v533, 40
    %v539 = vadd.s32 %v533, 48
    %v540 = vadd.s32 %v533, 56
    %v541 = vadd.s32 %v533, 64
    %v542 = vadd.s32 %v533, 72
    %v543 = vadd.s32 %v533, 80
    %v544 = vadd.s32 %v533, 88
    %v545 = vadd.s32 %v533, 96
    %v546 = vadd.s32 %v533, 104
    %v547 = vadd.s32 %v533, 112
    %v548 = vadd.s32 %v533, 120
    %v549 = vadd.s32 %v533, 128
    %v550 = vadd.s32 %v533, 136
    %v551 = vadd.s32 %v533, 144
    %v552 = vadd.s32 %v533, 152
    %v553 = vadd.s32 %v533, 160
    %v554 = vadd.s32 %v533, 168
    %v555 = vadd.s32 %v533, 176
    %v556 = vadd.s32 %v533, 184
    %v557 = vadd.s32 %v533, 192
    %v558 = vadd.s32 %v533, 200
    %v559 = vadd.s32 %v533, 208
    %v560 = vadd.s32 %v533, 216
    %v561 = vadd.s32 %v533, 224
    %v562 = vadd.s32 %v533, 232
    %v563 = vstv %s531
    %v564 = vadd.s32 %v563, %v533
    %v565 = vadd.s32 %v563, %v534
    %v566 = vadd.s32 %v563, %v535
    %v567 = vadd.s32 %v563, %v536
    %v568 = vadd.s32 %v563, %v537
    %v569 = vadd.s32 %v563, %v538
    %v570 = vadd.s32 %v563, %v539
    %v571 = vadd.s32 %v563, %v540
    %v572 = vadd.s32 %v563, %v541
    %v573 = vadd.s32 %v563, %v542
    %v574 = vadd.s32 %v563, %v543
    %v575 = vadd.s32 %v563, %v544
    %v576 = vadd.s32 %v563, %v545
    %v577 = vadd.s32 %v563, %v546
    %v578 = vadd.s32 %v563, %v547
    %v579 = vadd.s32 %v563, %v548
    %v580 = vadd.s32 %v563, %v549
    %v581 = vadd.s32 %v563, %v550
    %v582 = vadd.s32 %v563, %v551
    %v583 = vadd.s32 %v563, %v552
    %v584 = vadd.s32 %v563, %v553
    %v585 = vadd.s32 %v563, %v554
    %v586 = vadd.s32 %v563, %v555
    %v587 = vadd.s32 %v563, %v556
    %v588 = vadd.s32 %v563, %v557
    %v589 = vadd.s32 %v563, %v558
    %v590 = vadd.s32 %v563, %v559
    %v591 = vadd.s32 %v563, %v560
    %v592 = vadd.s32 %v563, %v561
    %v593 = vadd.s32 %v563, %v562
    %vm594 = vcmp.lt.s32.totalorder %v564, 237
    %vm595 = vcmp.lt.s32.totalorder %v565, 237
    %vm596 = vcmp.lt.s32.totalorder %v566, 237
    %vm597 = vcmp.lt.s32.totalorder %v567, 237
    %vm598 = vcmp.lt.s32.totalorder %v568, 237
    %vm599 = vcmp.lt.s32.totalorder %v569, 237
    %vm600 = vcmp.lt.s32.totalorder %v570, 237
    %vm601 = vcmp.lt.s32.totalorder %v571, 237
    %vm602 = vcmp.lt.s32.totalorder %v572, 237
    %vm603 = vcmp.lt.s32.totalorder %v573, 237
    %vm604 = vcmp.lt.s32.totalorder %v574, 237
    %vm605 = vcmp.lt.s32.totalorder %v575, 237
    %vm606 = vcmp.lt.s32.totalorder %v576, 237
    %vm607 = vcmp.lt.s32.totalorder %v577, 237
    %vm608 = vcmp.lt.s32.totalorder %v578, 237
    %vm609 = vcmp.lt.s32.totalorder %v579, 237
    %vm610 = vcmp.lt.s32.totalorder %v580, 237
    %vm611 = vcmp.lt.s32.totalorder %v581, 237
    %vm612 = vcmp.lt.s32.totalorder %v582, 237
    %vm613 = vcmp.lt.s32.totalorder %v583, 237
    %vm614 = vcmp.lt.s32.totalorder %v584, 237
    %vm615 = vcmp.lt.s32.totalorder %v585, 237
    %vm616 = vcmp.lt.s32.totalorder %v586, 237
    %vm617 = vcmp.lt.s32.totalorder %v587, 237
    %vm618 = vcmp.lt.s32.totalorder %v588, 237
    %vm619 = vcmp.lt.s32.totalorder %v589, 237
    %vm620 = vcmp.lt.s32.totalorder %v590, 237
    %vm621 = vcmp.lt.s32.totalorder %v591, 237
    %vm622 = vcmp.lt.s32.totalorder %v592, 237
    %vm623 = vcmp.lt.s32.totalorder %v593, 237
    %v624 = vsel %vm594, 1, 0
    %v625 = vsel %vm595, 1, 0
    %v626 = vsel %vm596, 1, 0
    %v627 = vsel %vm597, 1, 0
    %v628 = vsel %vm598, 1, 0
    %v629 = vsel %vm599, 1, 0
    %v630 = vsel %vm600, 1, 0
    %v631 = vsel %vm601, 1, 0
    %v632 = vsel %vm602, 1, 0
    %v633 = vsel %vm603, 1, 0
    %v634 = vsel %vm604, 1, 0
    %v635 = vsel %vm605, 1, 0
    %v636 = vsel %vm606, 1, 0
    %v637 = vsel %vm607, 1, 0
    %v638 = vsel %vm608, 1, 0
    %v639 = vsel %vm609, 1, 0
    %v640 = vsel %vm610, 1, 0
    %v641 = vsel %vm611, 1, 0
    %v642 = vsel %vm612, 1, 0
    %v643 = vsel %vm613, 1, 0
    %v644 = vsel %vm614, 1, 0
    %v645 = vsel %vm615, 1, 0
    %v646 = vsel %vm616, 1, 0
    %v647 = vsel %vm617, 1, 0
    %v648 = vsel %vm618, 1, 0
    %v649 = vsel %vm619, 1, 0
    %v650 = vsel %vm620, 1, 0
    %v651 = vsel %vm621, 1, 0
    %v652 = vsel %vm622, 1, 0
    %v653 = vsel %vm623, 1, 0
    %vm654 = vcmp.eq.s32.totalorder %v624, 1
    %vm655 = vcmp.eq.s32.totalorder %v625, 1
    %vm656 = vcmp.eq.s32.totalorder %v626, 1
    %vm657 = vcmp.eq.s32.totalorder %v627, 1
    %vm658 = vcmp.eq.s32.totalorder %v628, 1
    %vm659 = vcmp.eq.s32.totalorder %v629, 1
    %vm660 = vcmp.eq.s32.totalorder %v630, 1
    %vm661 = vcmp.eq.s32.totalorder %v631, 1
    %vm662 = vcmp.eq.s32.totalorder %v632, 1
    %vm663 = vcmp.eq.s32.totalorder %v633, 1
    %vm664 = vcmp.eq.s32.totalorder %v634, 1
    %vm665 = vcmp.eq.s32.totalorder %v635, 1
    %vm666 = vcmp.eq.s32.totalorder %v636, 1
    %vm667 = vcmp.eq.s32.totalorder %v637, 1
    %vm668 = vcmp.eq.s32.totalorder %v638, 1
    %vm669 = vcmp.eq.s32.totalorder %v639, 1
    %vm670 = vcmp.eq.s32.totalorder %v640, 1
    %vm671 = vcmp.eq.s32.totalorder %v641, 1
    %vm672 = vcmp.eq.s32.totalorder %v642, 1
    %vm673 = vcmp.eq.s32.totalorder %v643, 1
    %vm674 = vcmp.eq.s32.totalorder %v644, 1
    %vm675 = vcmp.eq.s32.totalorder %v645, 1
    %vm676 = vcmp.eq.s32.totalorder %v646, 1
    %vm677 = vcmp.eq.s32.totalorder %v647, 1
    %vm678 = vcmp.eq.s32.totalorder %v648, 1
    %vm679 = vcmp.eq.s32.totalorder %v649, 1
    %vm680 = vcmp.eq.s32.totalorder %v650, 1
    %vm681 = vcmp.eq.s32.totalorder %v651, 1
    %vm682 = vcmp.eq.s32.totalorder %v652, 1
    %vm683 = vcmp.eq.s32.totalorder %v653, 1
    %v684 = vsel %vm654, %v263, 0.0
    %v685 = vsel %vm655, %v266, 0.0
    %v686 = vsel %vm656, %v271, 0.0
    %v687 = vsel %vm657, %v274, 0.0
    %v688 = vsel %vm658, %v279, 0.0
    %v689 = vsel %vm659, %v282, 0.0
    %v690 = vsel %vm660, %v287, 0.0
    %v691 = vsel %vm661, %v290, 0.0
    %v692 = vsel %vm662, %v295, 0.0
    %v693 = vsel %vm663, %v298, 0.0
    %v694 = vsel %vm664, %v303, 0.0
    %v695 = vsel %vm665, %v306, 0.0
    %v696 = vsel %vm666, %v311, 0.0
    %v697 = vsel %vm667, %v314, 0.0
    %v698 = vsel %vm668, %v319, 0.0
    %v699 = vsel %vm669, %v322, 0.0
    %v700 = vsel %vm670, %v327, 0.0
    %v701 = vsel %vm671, %v330, 0.0
    %v702 = vsel %vm672, %v335, 0.0
    %v703 = vsel %vm673, %v338, 0.0
    %v704 = vsel %vm674, %v343, 0.0
    %v705 = vsel %vm675, %v346, 0.0
    %v706 = vsel %vm676, %v351, 0.0
    %v707 = vsel %vm677, %v354, 0.0
    %v708 = vsel %vm678, %v359, 0.0
    %v709 = vsel %vm679, %v362, 0.0
    %v710 = vsel %vm680, %v367, 0.0
    %v711 = vsel %vm681, %v370, 0.0
    %v712 = vsel %vm682, %v375, 0.0
    %v713 = vsel %vm683, %v378, 0.0
    %v714 = vadd.f32 %v684, %v685
    %v715 = vadd.f32 %v714, %v686
    %v716 = vadd.f32 %v715, %v687
    %v717 = vadd.f32 %v716, %v688
    %v718 = vadd.f32 %v717, %v689
    %v719 = vadd.f32 %v718, %v690
    %v720 = vadd.f32 %v719, %v691
    %v721 = vadd.f32 %v720, %v692
    %v722 = vadd.f32 %v721, %v693
    %v723 = vadd.f32 %v722, %v694
    %v724 = vadd.f32 %v723, %v695
    %v725 = vadd.f32 %v724, %v696
    %v726 = vadd.f32 %v725, %v697
    %v727 = vadd.f32 %v726, %v698
    %v728 = vadd.f32 %v727, %v699
    %v729 = vadd.f32 %v728, %v700
    %v730 = vadd.f32 %v729, %v701
    %v731 = vadd.f32 %v730, %v702
    %v732 = vadd.f32 %v731, %v703
    %v733 = vadd.f32 %v732, %v704
    %v734 = vadd.f32 %v733, %v705
    %v735 = vadd.f32 %v734, %v706
    %v736 = vadd.f32 %v735, %v707
    %v737 = vadd.f32 %v736, %v708
    %v738 = vadd.f32 %v737, %v709
    %v739 = vadd.f32 %v738, %v710
    %v740 = vadd.f32 %v739, %v711
    %v741 = vadd.f32 %v740, %v712
    %v742 = vadd.f32 %v741, %v713
    %v743 = vrot.slane %v742, 4
    %v744 = vadd.f32 %v742, %v743
    %v745 = vrot.slane %v744, 2
    %v746 = vadd.f32 %v744, %v745
    %v747 = vrot.slane %v746, 1
    %v748 = vadd.f32 %v746, %v747
    %v749 = vmul.f32 %v684, %v684
    %v750 = vmul.f32 %v685, %v685
    %v751 = vmul.f32 %v686, %v686
    %v752 = vmul.f32 %v687, %v687
    %v753 = vmul.f32 %v688, %v688
    %v754 = vmul.f32 %v689, %v689
    %v755 = vmul.f32 %v690, %v690
    %v756 = vmul.f32 %v691, %v691
    %v757 = vmul.f32 %v692, %v692
    %v758 = vmul.f32 %v693, %v693
    %v759 = vmul.f32 %v694, %v694
    %v760 = vmul.f32 %v695, %v695
    %v761 = vmul.f32 %v696, %v696
    %v762 = vmul.f32 %v697, %v697
    %v763 = vmul.f32 %v698, %v698
    %v764 = vmul.f32 %v699, %v699
    %v765 = vmul.f32 %v700, %v700
    %v766 = vmul.f32 %v701, %v701
    %v767 = vmul.f32 %v702, %v702
    %v768 = vmul.f32 %v703, %v703
    %v769 = vmul.f32 %v704, %v704
    %v770 = vmul.f32 %v705, %v705
    %v771 = vmul.f32 %v706, %v706
    %v772 = vmul.f32 %v707, %v707
    %v773 = vmul.f32 %v708, %v708
    %v774 = vmul.f32 %v709, %v709
    %v775 = vmul.f32 %v710, %v710
    %v776 = vmul.f32 %v711, %v711
    %v777 = vmul.f32 %v712, %v712
    %v778 = vmul.f32 %v713, %v713
    %v779 = vadd.f32 %v749, %v750
    %v780 = vadd.f32 %v779, %v751
    %v781 = vadd.f32 %v780, %v752
    %v782 = vadd.f32 %v781, %v753
    %v783 = vadd.f32 %v782, %v754
    %v784 = vadd.f32 %v783, %v755
    %v785 = vadd.f32 %v784, %v756
    %v786 = vadd.f32 %v785, %v757
    %v787 = vadd.f32 %v786, %v758
    %v788 = vadd.f32 %v787, %v759
    %v789 = vadd.f32 %v788, %v760
    %v790 = vadd.f32 %v789, %v761
    %v791 = vadd.f32 %v790, %v762
    %v792 = vadd.f32 %v791, %v763
    %v793 = vadd.f32 %v792, %v764
    %v794 = vadd.f32 %v793, %v765
    %v795 = vadd.f32 %v794, %v766
    %v796 = vadd.f32 %v795, %v767
    %v797 = vadd.f32 %v796, %v768
    %v798 = vadd.f32 %v797, %v769
    %v799 = vadd.f32 %v798, %v770
    %v800 = vadd.f32 %v799, %v771
    %v801 = vadd.f32 %v800, %v772
    %v802 = vadd.f32 %v801, %v773
    %v803 = vadd.f32 %v802, %v774
    %v804 = vadd.f32 %v803, %v775
    %v805 = vadd.f32 %v804, %v776
    %v806 = vadd.f32 %v805, %v777
    %v807 = vadd.f32 %v806, %v778
    %v808 = vrot.slane %v807, 4
    %v809 = vadd.f32 %v807, %v808
    %v810 = vrot.slane %v809, 2
    %v811 = vadd.f32 %v809, %v810
    %v812 = vrot.slane %v811, 1
    %v813 = vadd.f32 %v811, %v812
    %vm814 = vcmask 1040384
    %v815 = vsel %vm814, %v748, %v813
    %816 = vst [vmem:[#allocation8] sm:$0x3] %v815
    // Predicated region
    $region18: #{tpu_custom_call.1} parent=1 // pred_check
      _
    $region19: #{tpu_custom_call.1} parent=1 // pred_check_branch
      %818 = sbr.rel (0) target = $region21
    $region20: #{tpu_custom_call.1} parent=1 // pred_region
      %s820 = ssub.s32 1920, 1920
      %821 = vsyncadd [#allocation4], %s820
      %s822 = sshll.u32 [#allocation7], 4
      %s823 = int_to_ptr.vmem [resolvable:$true] %s822
      %828 = dma.vmem_to_hbm [thread:$0]  %s823, 1920, %s2, [#allocation4], 64, 64, 4
    $region21: #{tpu_custom_call.1} parent=1 // pred_fallthru
      _
    // Predicated region
    $region22: #{tpu_custom_call.1} parent=1 // pred_check
      _
    $region23: #{tpu_custom_call.1} parent=1 // pred_check_branch
      %830 = sbr.rel (0) target = $region25
    $region24: #{tpu_custom_call.1} parent=1 // pred_region
      %s832 = ssub.s32 32, 32
      %833 = vsyncadd [#allocation9], %s832
      %s835 = sshll.u32 [#allocation8], 4
      %s836 = int_to_ptr.vmem [resolvable:$true] %s835
      %838 = dma.vmem_to_hbm [thread:$0]  %s836, 32, %s3, [#allocation9]
    $region25: #{tpu_custom_call.1} parent=1 // pred_fallthru
      _
    // Predicated region
    $region26: #{tpu_custom_call.1} parent=1 // pred_check
      _
    $region27: #{tpu_custom_call.1} parent=1 // pred_check_branch
      %840 = sbr.rel (0) target = $region29
    $region28: #{tpu_custom_call.1} parent=1 // pred_region
      %841 = dma.done [#allocation4], 1920
    $region29: #{tpu_custom_call.1} parent=1 // pred_fallthru
      _
    // Predicated region
    $region30: #{tpu_custom_call.1} parent=1 // pred_check
      _
    $region31: #{tpu_custom_call.1} parent=1 // pred_check_branch
      %843 = sbr.rel (0) target = $region33
    $region32: #{tpu_custom_call.1} parent=1 // pred_region
      %844 = dma.done [#allocation9], 32
    $region33: #{tpu_custom_call.1} parent=1 // pred_fallthru
      _
    %845 = vsyncpa [#allocation3], 1
    %846 = vsyncpa [#allocation6], 1
    %847 = vsyncpa [#allocation4], 1
    %848 = vsyncpa [#allocation9], 1

</llo_original>
